<compile_context>
chip_gen: v6e
topology: v6e:2x2x1
jax: 0.10.0
libtpu: 0.0.40
codegen_flags: <defaults>
</compile_context>

<pallas_src>
import jax
import jax.numpy as jnp
from jax import lax
from jax.experimental import pallas as pl
from jax.experimental.pallas import tpu as pltpu


def _round_up(x: int, m: int) -> int:
    return ((x + m - 1) // m) * m


def _choose_tm(M: int, tm_hint: int):
    """Pick an M tile that is a multiple of 8 and exposes >=2 parallel blocks when possible."""
    Mr = _round_up(M, 8)
    tm_eff = min(_round_up(tm_hint, 8), Mr)
    # v7x has 2 TensorCores per chip: make sure the 'parallel' M axis has >= 2 blocks.
    if Mr // tm_eff < 2 and Mr >= 16:
        tm_eff = _round_up(-(-Mr // 2), 8)
    Mp = _round_up(M, tm_eff)
    return tm_eff, Mp


# --------------------------------------------------------------------------------------
# Kernels
# --------------------------------------------------------------------------------------
def _key_resident_kernel(x_ref, w_ref, o_ref):
    # x_ref: (tm, K) in the input dtype; w_ref: (K, N) resident in compute dtype.
    # Cast x on the VPU (hidden under the MXU matmul) instead of a wrapper-side astype pass.
    x = x_ref[...].astype(w_ref.dtype)
    o_ref[...] = jnp.dot(
        x, w_ref[...], preferred_element_type=jnp.float32
    ).astype(o_ref.dtype)


def _key_tiled_kernel(x_ref, w_ref, o_ref, acc_ref):
    # Fallback for weights too big to keep resident.
    # x_ref: (tm, tk)  w_ref: (tk, tn)  o_ref: (tm, tn)  acc_ref: f32 accumulator.
    @pl.when(pl.program_id(2) == 0)
    def _():
        acc_ref[...] = jnp.zeros_like(acc_ref)

    acc_ref[...] += jnp.dot(
        x_ref[...].astype(w_ref.dtype), w_ref[...],
        preferred_element_type=jnp.float32,
    )

    @pl.when(pl.program_id(2) == pl.num_programs(2) - 1)
    def _():
        o_ref[...] = acc_ref[...].astype(o_ref.dtype)


# --------------------------------------------------------------------------------------
# Wrapper
# --------------------------------------------------------------------------------------
def key_forward(
    x,
    weight,
    *,
    compute_dtype=jnp.bfloat16,
    tm=512,
    tn=256,
    tk=1024,
    resident_weight_bytes=12 * 1024 * 1024,
):
    """Equivalent of Key.forward: x @ weight.T (no bias).

    x:      (batch, seq, dim_input)
    weight: (dim_attn, dim_input)   (PyTorch nn.Linear layout)
    compute_dtype: MXU operand dtype (default bf16 = peak path); accumulation is always
                   f32 and the output keeps x's dtype.  Pass jnp.float32 for exact math.
    returns (batch, seq, dim_attn)
    """
    orig_dtype = x.dtype
    batch, seq, dim_input = x.shape
    dim_attn, dim_input_w = weight.shape
    assert dim_input_w == dim_input, "weight shape must be (dim_attn, dim_input)"

    if compute_dtype is None:
        compute_dtype = orig_dtype

    M, K, N = batch * seq, dim_input, dim_attn

    # One-time weight transpose + cast (small vs. activation traffic); guarantees a plain
    # NN contraction on the MXU.  TODO(synk): cache this at model init in a real model.
    w_t = weight.T.astype(compute_dtype)  # (K, N)

    x2d = x.reshape(M, K)
    x_item = jnp.dtype(x2d.dtype).itemsize
    w_item = jnp.dtype(compute_dtype).itemsize
    o_item = jnp.dtype(orig_dtype).itemsize

    cost = pl.CostEstimate(
        flops=2 * M * N * K,
        transcendentals=0,
        bytes_accessed=M * K * x_item + K * N * w_item + M * N * o_item,
    )

    # Budget assumes double buffering of every BlockSpec; stays under the 32 MiB
    # scoped-VMEM default on all generations (v5e/v6e/v7x), so no vmem_limit_bytes needed.
    VMEM_BUDGET = 24 * 1024 * 1024
    w_vmem_bytes = 2 * K * N * w_item

    if w_vmem_bytes <= resident_weight_bytes:
        # ------------------ Weight-resident fast path ------------------
        tm_eff, Mp = _choose_tm(M, tm)

        def _need(t):
            return 2 * t * K * x_item + w_vmem_bytes + 2 * t * N * o_item

        while tm_eff > 8 and _need(tm_eff) > VMEM_BUDGET:
            tm_eff = max(8, _round_up(tm_eff // 2, 8))
            Mp = _round_up(M, tm_eff)

        if Mp != M:  # only pad when M is ragged w.r.t. the tile
            x2d = jnp.pad(x2d, ((0, Mp - M), (0, 0)))

        out = pl.pallas_call(
            _key_resident_kernel,
            out_shape=jax.ShapeDtypeStruct((Mp, N), orig_dtype),
            grid_spec=pltpu.PrefetchScalarGridSpec(
                num_scalar_prefetch=0,
                grid=(Mp // tm_eff,),
                in_specs=[
                    pl.BlockSpec((tm_eff, K), lambda i: (i, 0)),  # stream x tiles
                    pl.BlockSpec((K, N), lambda i: (0, 0)),       # constant idx -> DMA'd once
                ],
                out_specs=pl.BlockSpec((tm_eff, N), lambda i: (i, 0)),
            ),
            compiler_params=pltpu.CompilerParams(
                dimension_semantics=("parallel",)
            ),
            cost_estimate=cost,
        )(x2d, w_t)

        if Mp != M:
            out = out[:M]
        return out.reshape(batch, seq, N)

    # ------------------ K/N-tiled fallback (huge weights) ------------------
    tm_eff, Mp = _choose_tm(M, tm)
    tn_eff = min(_round_up(tn, 128), _round_up(N, 128))
    tk_eff = min(_round_up(tk, 128), _round_up(K, 128))
    Np = _round_up(N, tn_eff)
    Kp = _round_up(K, tk_eff)

    if (Mp, Kp) != (M, K):
        x2d = jnp.pad(x2d, ((0, Mp - M), (0, Kp - K)))
    w_p = w_t
    if (Kp, Np) != (K, N):
        w_p = jnp.pad(w_t, ((0, Kp - K), (0, Np - N)))

    grid = (Mp // tm_eff, Np // tn_eff, Kp // tk_eff)

    out = pl.pallas_call(
        _key_tiled_kernel,
        out_shape=jax.ShapeDtypeStruct((Mp, Np), orig_dtype),
        grid_spec=pltpu.PrefetchScalarGridSpec(
            num_scalar_prefetch=0,
            grid=grid,
            in_specs=[
                pl.BlockSpec((tm_eff, tk_eff), lambda i, j, k: (i, k)),
                pl.BlockSpec((tk_eff, tn_eff), lambda i, j, k: (k, j)),
            ],
            out_specs=pl.BlockSpec((tm_eff, tn_eff), lambda i, j, k: (i, j)),
            scratch_shapes=[pltpu.VMEM((tm_eff, tn_eff), jnp.float32)],
        ),
        compiler_params=pltpu.CompilerParams(
            dimension_semantics=("parallel", "parallel", "arbitrary")
        ),
        cost_estimate=cost,
    )(x2d, w_p)

    if (Mp, Np) != (M, N):
        out = out[:M, :N]
    return out.reshape(batch, seq, N)


# --------------------------------------------------------------------------------------
# Self-test
# --------------------------------------------------------------------------------------
if __name__ == "__main__":
    key = jax.random.PRNGKey(0)
    kx, kw, kx2, kw2 = jax.random.split(key, 4)

    # ---- Small shapes consistent with the module: Linear(dim_input -> dim_attn), no bias.
    batch, seq = 2, 8
    dim_input, dim_attn = 32, 16

    x = jax.random.normal(kx, (batch, seq, dim_input), dtype=jnp.float32)
    bound = 1.0 / (dim_input ** 0.5)
    weight = jax.random.uniform(
        kw, (dim_attn, dim_input), dtype=jnp.float32, minval=-bound, maxval=bound
    )

    ref = jnp.einsum("bsi,ai->bsa", x, weight)

    # f32 operand path (exact semantics).
    out_f32 = jax.block_until_ready(key_forward(x, weight, compute_dtype=jnp.float32))
    assert out_f32.shape == (batch, seq, dim_attn)
    assert jnp.allclose(out_f32, ref, atol=1e-5, rtol=1e-5)

    # Default bf16 operand path (MXU-peak, f32 accumulation) — looser tolerance.
    out_bf16 = jax.block_until_ready(key_forward(x, weight))
    assert out_bf16.dtype == jnp.float32
    assert jnp.allclose(out_bf16, ref, atol=2e-2, rtol=2e-2)

    # ---- Larger shapes: weight-resident path with 2 parallel M blocks.
    b2, s2, di2, da2 = 4, 128, 1024, 256   # M=512, K=1024, N=256
    x2 = jax.random.normal(kx2, (b2, s2, di2), dtype=jnp.float32)
    w2 = jax.random.uniform(
        kw2, (da2, di2), dtype=jnp.float32,
        minval=-1.0 / (di2 ** 0.5), maxval=1.0 / (di2 ** 0.5),
    )
    ref2 = jnp.einsum("bsi,ai->bsa", x2, w2)
    out2 = jax.block_until_ready(key_forward(x2, w2))
    assert out2.shape == (b2, s2, da2)
    assert jnp.allclose(out2, ref2, atol=5e-2, rtol=5e-2)

    # ---- Same shapes, forcing the K/N-tiled fallback path (resident budget = 0).
    out3 = jax.block_until_ready(key_forward(x2, w2, resident_weight_bytes=0))
    assert out3.shape == (b2, s2, da2)
    assert jnp.allclose(out3, ref2, atol=5e-2, rtol=5e-2)

    print("KERNEL_OK")
</pallas_src>

<mosaic_0001>
module attributes {stable_mosaic.version = 11 : i64} {
  func.func @_key_resident_kernel(%arg0: i32, %arg1: memref<8x32xf32, #tpu.memory_space<vmem>>, %arg2: memref<32x16xf32, #tpu.memory_space<vmem>>, %arg3: memref<8x16xf32, #tpu.memory_space<vmem>>) attributes {dimension_semantics = [#tpu.dimension_semantics<parallel>], iteration_bounds = array<i64: 2>, scalar_prefetch = 0 : i64, scratch_operands = 0 : i64, tpu.core_type = #tpu.core_type<tc>, window_params = [{transform_indices = @transform_0, window_bounds = array<i64: 8, 32>}, {pipeline_mode = #tpu.pipeline_mode<synchronous>, transform_indices = @transform_1, window_bounds = array<i64: 32, 16>}, {transform_indices = @transform_2, window_bounds = array<i64: 8, 16>}]} {
    %c0 = arith.constant 0 : index
    %c0_0 = arith.constant 0 : index
    %0 = vector.load %arg1[%c0, %c0_0] : memref<8x32xf32, #tpu.memory_space<vmem>>, vector<8x32xf32>
    %c0_1 = arith.constant 0 : index
    %c0_2 = arith.constant 0 : index
    %1 = vector.load %arg2[%c0_1, %c0_2] : memref<32x16xf32, #tpu.memory_space<vmem>>, vector<32x16xf32>
    %cst = arith.constant dense<0.000000e+00> : vector<8x16xf32>
    %2 = tpu.matmul %0, %1, %cst {dimension_numbers = #tpu.dot_dimension_numbers<[1], [0], [0], [1], [0, 0, 1, 1], [], []>} : vector<8x32xf32>, vector<32x16xf32>, vector<8x16xf32> -> vector<8x16xf32>
    %c0_3 = arith.constant 0 : index
    %c0_4 = arith.constant 0 : index
    %3 = vector.load %arg3[%c0_3, %c0_4] : memref<8x16xf32, #tpu.memory_space<vmem>>, vector<8x16xf32>
    tpu.vector_store %arg3[%c0_3, %c0_4], %2 {strides = array<i32>} : memref<8x16xf32, #tpu.memory_space<vmem>>, vector<8x16xf32>,
    return
  }
  func.func @transform_0(%arg0: i32) -> (i32, i32) {
    %c0_i32 = arith.constant 0 : i32
    %c0_i32_0 = arith.constant 0 : i32
    return %arg0, %c0_i32 : i32, i32
  }
  func.func @transform_1(%arg0: i32) -> (i32, i32) {
    %c0_i32 = arith.constant 0 : i32
    %c0_i32_0 = arith.constant 0 : i32
    %c0_i32_1 = arith.constant 0 : i32
    return %c0_i32, %c0_i32_0 : i32, i32
  }
  func.func @transform_2(%arg0: i32) -> (i32, i32) {
    %c0_i32 = arith.constant 0 : i32
    %c0_i32_0 = arith.constant 0 : i32
    return %arg0, %c0_i32 : i32, i32
  }
}

</mosaic_0001>

<llo_original>
// kernel: tpu_custom_call.1
$region0: #{tpu_custom_call.1}
  #allocation0 [shape = 'u32[]', space=smem, size = 0x4, offset = 0x4, fixed_abs, tag = 'smem constant byte address 0x4 - core index']
  #allocation1 [shape = 'u32[144,128]{1,0:T(1,128)}', space=vmem, size = 0x12000, scoped, tag = 'internal scratch']
  %s0 = inlined_call_operand.vmem [shape: f32[16,32], index: 0, kind: input, shape index: {}]
  %s1 = inlined_call_operand.vmem [shape: f32[32,16], index: 1, kind: input, shape index: {}]
  %s2 = inlined_call_operand.hbm [shape: f32[16,16], index: 2, kind: output, shape index: {}]
  %s3 = sld [smem:[#allocation0]]
  $region41: #{tpu_custom_call.1} parent=0
    _
  %s5 = ssub.s32 1, %s3
  %s6 = scalar_select 0, %s5, %s3
  $region1: #{tpu_custom_call.1} parent=0
    #allocation2 [shape = 'u8[8192]{0}', space=vmem, size = 0x2000, scoped, tag = 'output window, operand 0']
    #allocation3 [shape = 's32[2]{0}', space=sflag, size = 0x8, scoped, tag = 'scoped memory for tpu_custom_call.1']
    %7 = vsyncpa [#allocation3], 0
    %s8 = scalar_lea.sflag [#allocation3], 1
    %9 = vsyncpa %s8, 0
    loop: start=0, step=1, limit=4
    $region2: #{tpu_custom_call.1} parent=1 // loop_pre_header
      _
    $region3: #{tpu_custom_call.1} parent=1 // loop_header
      %s11 = sphi 0, %s15
      %p12 = scmp.ge.s32.totalorder %s11, 4
      %s21 = sphi 0, %s23
      %s24 = sphi 0, %s21
      %s25 = sphi 0, %s24
      %s41 = sphi 0, %s25
      %s45 = sphi 0, %s45
      %s47 = sphi 0, %s45
      %s48 = sphi 0, %s47
      %s62 = sphi 0, %s48
      %s68 = sphi 0, %s70
      %s71 = sphi 0, %s68
      %s72 = sphi 0, %s71
      %s88 = sphi 0, %s72
    $region4: #{tpu_custom_call.1} parent=1 // loop_header_branch
      %14 = sbr.rel (%p12) target = $region8
    $region5: #{tpu_custom_call.1} parent=1 // loop_body
      %s16 = ssub.s32 %s11, 1
      %s17 = ssub.s32 %s11, 2
      %s18 = sadd.s32 %s11, 1
      %s19 = ssub.s32 %s11, %s18
      %p20 = scmp.eq.s32.totalorder %s19, 0
      %s22 = sadd.s32 %s21, 1
      %s23 = scalar_select %p20, %s21, %s22
      %p26 = pneg %p20
      %p27 = scmp.eq.s32.totalorder %s11, 1
      %p28 = por %p26, %p27
      %p29 = scmp.ne.s32.totalorder %s21, %s24
      %p30 = scmp.eq.s32.totalorder %s11, 0
      %p31 = por %p29, %p30
      %p32 = scmp.ne.s32.totalorder %s21, %s24
      %p33 = scmp.eq.s32.totalorder %s16, 1
      %p34 = por %p32, %p33
      %p35 = scmp.ne.s32.totalorder %s24, %s25
      %p36 = scmp.eq.s32.totalorder %s16, 0
      %p37 = por %p35, %p36
      %p38 = scmp.ne.s32.totalorder %s24, %s25
      %p39 = scmp.eq.s32.totalorder %s17, 1
      %p40 = por %p38, %p39
      %p42 = scmp.ne.s32.totalorder %s25, %s41
      %p43 = scmp.eq.s32.totalorder %s17, 0
      %p44 = por %p42, %p43
      %s46 = sadd.s32 %s45, 1
      %p49 = scmp.eq.s32.totalorder %s11, 1
      %p50 = scmp.ne.s32.totalorder %s45, %s47
      %p51 = scmp.eq.s32.totalorder %s11, 0
      %p52 = por %p50, %p51
      %p53 = scmp.ne.s32.totalorder %s45, %s47
      %p54 = scmp.eq.s32.totalorder %s16, 1
      %p55 = por %p53, %p54
      %p56 = scmp.ne.s32.totalorder %s47, %s48
      %p57 = scmp.eq.s32.totalorder %s16, 0
      %p58 = por %p56, %p57
      %p59 = scmp.ne.s32.totalorder %s47, %s48
      %p60 = scmp.eq.s32.totalorder %s17, 1
      %p61 = por %p59, %p60
      %p63 = scmp.ne.s32.totalorder %s48, %s62
      %p64 = scmp.eq.s32.totalorder %s17, 0
      %p65 = por %p63, %p64
      %s66 = ssub.s32 %s11, %s18
      %p67 = scmp.eq.s32.totalorder %s66, 0
      %s69 = sadd.s32 %s68, 1
      %s70 = scalar_select %p67, %s68, %s69
      %p73 = pneg %p67
      %p74 = scmp.eq.s32.totalorder %s11, 1
      %p75 = por %p73, %p74
      %p76 = scmp.ne.s32.totalorder %s68, %s71
      %p77 = scmp.eq.s32.totalorder %s11, 0
      %p78 = por %p76, %p77
      %p79 = scmp.ne.s32.totalorder %s68, %s71
      %p80 = scmp.eq.s32.totalorder %s16, 1
      %p81 = por %p79, %p80
      %p82 = scmp.ne.s32.totalorder %s71, %s72
      %p83 = scmp.eq.s32.totalorder %s16, 0
      %p84 = por %p82, %p83
      %p85 = scmp.ne.s32.totalorder %s71, %s72
      %p86 = scmp.eq.s32.totalorder %s17, 1
      %p87 = por %p85, %p86
      %p89 = scmp.ne.s32.totalorder %s72, %s88
      %p90 = scmp.eq.s32.totalorder %s17, 0
      %p91 = por %p89, %p90
      %p92 = scmp.le.s32.totalorder 1, %s11
      %p93 = scmp.lt.s32.totalorder %s11, 3
      %p94 = pnand %p92, %p93
      %p95 = pneg %p94
      // Predicated region
      $region9: #{tpu_custom_call.1} parent=5 // pred_check
        _
      $region10: #{tpu_custom_call.1} parent=5 // pred_check_branch
        %97 = sbr.rel (%p94) target = $region12
      $region11: #{tpu_custom_call.1} parent=5 // pred_region
        %s98 = ssub.s32 %s11, 1
        // Predicated region
        $region13: #{tpu_custom_call.1} parent=11 // pred_check
          %p99 = pneg %p58
        $region14: #{tpu_custom_call.1} parent=11 // pred_check_branch
          %101 = sbr.rel (%p99) target = $region16
        $region15: #{tpu_custom_call.1} parent=11 // pred_region
          _
        $region16: #{tpu_custom_call.1} parent=11 // pred_fallthru
          _
      $region12: #{tpu_custom_call.1} parent=5 // pred_fallthru
        _
      %p102 = scmp.lt.s32.totalorder %s11, 2
      // Predicated region
      $region17: #{tpu_custom_call.1} parent=5 // pred_check
        %p103 = pneg %p102
      $region18: #{tpu_custom_call.1} parent=5 // pred_check_branch
        %105 = sbr.rel (%p103) target = $region20
      $region19: #{tpu_custom_call.1} parent=5 // pred_region
        // Predicated region
        $region21: #{tpu_custom_call.1} parent=19 // pred_check
          %p106 = pneg %p31
        $region22: #{tpu_custom_call.1} parent=19 // pred_check_branch
          %108 = sbr.rel (%p106) target = $region24
        $region23: #{tpu_custom_call.1} parent=19 // pred_region
          %p109 = scmp.lt.s32.totalorder %s11, 1
          %s110 = scalar_select %p109, %s11, 1
          %s111 = smul.addr %s110, 8
          %s112 = scalar_lea.vmem %s0, %s111
        $region24: #{tpu_custom_call.1} parent=19 // pred_fallthru
          _
      $region20: #{tpu_custom_call.1} parent=5 // pred_fallthru
        _
      %p113 = scmp.le.s32.totalorder 1, %s11
      %p114 = scmp.lt.s32.totalorder %s11, 3
      %p115 = pnand %p113, %p114
      %p116 = pneg %p115
      // Predicated region
      $region25: #{tpu_custom_call.1} parent=5 // pred_check
        _
      $region26: #{tpu_custom_call.1} parent=5 // pred_check_branch
        %118 = sbr.rel (%p115) target = $region28
      $region27: #{tpu_custom_call.1} parent=5 // pred_region
        %s119 = ssub.s32 %s11, 1
        %p120 = scmp.lt.s32.totalorder %s16, 1
        %s121 = scalar_select %p120, %s16, 1
        %s122 = smul.addr %s121, 8
        %s123 = scalar_lea.vmem %s0, %s122
        %p124 = pneg %p37
        %p125 = pneg %p34
        %p126 = pneg %p58
        %p127 = pneg %p55
        %p128 = pneg %p84
        %p129 = pneg %p81
        %s130 = sand.u32 %s71, 1
        %s131 = scalar_lea.sflag [#allocation3], %s130
        %s132 = sand.u32 %s71, 1
        %s133 = smul.addr %s132, 8
        %s134 = scalar_lea.vmem [#allocation2], %s133
        %p135 = scmp.lt.s32.totalorder %s16, 1
        %s136 = scalar_select %p135, %s16, 1
        %s137 = smul.addr %s136, 8
        %s138 = scalar_lea.vmem %s0, %s137
        %v139 = vld [vmem:[%s138] sm:$0xff]
        %v140 = vld [vmem:[%s1] sm:$0xff]
        %v141 = vld [vmem:[%s1 + $0x8] sm:$0xff]
        %v142 = vld [vmem:[%s1 + $0x10] sm:$0xff]
        %v143 = vld [vmem:[%s1 + $0x18] sm:$0xff]
        %vm144 = vcmask 261120
        %v146 = vsel %vm144, %v139, 0
        %148 = vmatprep.subr.mxu0 0.0
        %149 = vmatpush1.msra.mxu0 0.0
        %150 = vmatprep.subr.mxu0 0.0
        %151 = vmatpush1.msra.mxu0 0.0
        %152 = vmatprep.subr.mxu0 0.0
        %153 = vmatpush1.msra.mxu0 0.0
        %154 = vmatprep.subr.mxu0 0.0
        %155 = vmatpush1.msra.mxu0 0.0
        %156 = vmatprep.subr.mxu0 0.0
        %157 = vmatpush1.msra.mxu0 0.0
        %158 = vmatprep.subr.mxu0 0.0
        %159 = vmatpush1.msra.mxu0 0.0
        %160 = vmatprep.subr.mxu0 0.0
        %161 = vmatpush1.msra.mxu0 0.0
        %162 = vmatprep.subr.mxu0 0.0
        %163 = vmatpush1.msra.mxu0 0.0
        %164 = vmatprep.subr.mxu0 0.0
        %165 = vmatpush1.msra.mxu0 0.0
        %166 = vmatprep.subr.mxu0 0.0
        %167 = vmatpush1.msra.mxu0 0.0
        %168 = vmatprep.subr.mxu0 0.0
        %169 = vmatpush1.msra.mxu0 0.0
        %170 = vmatprep.subr.mxu0 0.0
        %171 = vmatpush1.msra.mxu0 0.0
        %172 = vmatprep.subr.mxu0 0.0
        %173 = vmatpush1.msra.mxu0 %v143
        %174 = vmatprep.subr.mxu0 0.0
        %175 = vmatpush1.msra.mxu0 %v142
        %176 = vmatprep.subr.mxu0 0.0
        %177 = vmatpush1.msra.mxu0 %v141
        %178 = vmatprep.subr.mxu0 0.0
        %179 = vmatpush1.msra.mxu0 %v140
        %180 = vmatprep.subr.mxu0 0.0
        %181 = vmatpush2.msra.mxu0 0.0
        %182 = vmatprep.subr.mxu0 0.0
        %183 = vmatpush2.msra.mxu0 0.0
        %184 = vmatprep.subr.mxu0 0.0
        %185 = vmatpush2.msra.mxu0 0.0
        %186 = vmatprep.subr.mxu0 0.0
        %187 = vmatpush2.msra.mxu0 0.0
        %188 = vmatprep.subr.mxu0 0.0
        %189 = vmatpush2.msra.mxu0 0.0
        %190 = vmatprep.subr.mxu0 0.0
        %191 = vmatpush2.msra.mxu0 0.0
        %192 = vmatprep.subr.mxu0 0.0
        %193 = vmatpush2.msra.mxu0 0.0
        %194 = vmatprep.subr.mxu0 0.0
        %195 = vmatpush2.msra.mxu0 0.0
        %196 = vmatprep.subr.mxu0 0.0
        %197 = vmatpush2.msra.mxu0 0.0
        %198 = vmatprep.subr.mxu0 0.0
        %199 = vmatpush2.msra.mxu0 0.0
        %200 = vmatprep.subr.mxu0 0.0
        %201 = vmatpush2.msra.mxu0 0.0
        %202 = vmatprep.subr.mxu0 0.0
        %203 = vmatpush2.msra.mxu0 0.0
        %204 = vmatprep.subr.mxu0 0.0
        %205 = vmatpush2.msra.mxu0 0.0
        %206 = vmatprep.subr.mxu0 0.0
        %207 = vmatpush2.msra.mxu0 0.0
        %208 = vmatprep.subr.mxu0 0.0
        %209 = vmatpush2.msra.mxu0 0.0
        %210 = vmatprep.subr.mxu0 0.0
        %211 = vmatpush2.msra.mxu0 0.0
        %212 = vmatprep.mubr.f32.mxu0 0.0
        %213 = vmatmul.mubr.f32.gmra.mxu0 %v146
        %v214 = vpop.f32.mrf.mxu0
        %v215 = vadd.f32 0.0, %v214
        %v216 = vpop.f32.mrf.mxu0
        %217 = vdwg.mxu0
        %vm218 = vcmask 130048
        %219 = vst.msk [vmem:[%s134] sm:$0xff] %vm218, %v215
        %s220 = sand.u32 %s71, 1
        %s221 = scalar_lea.sflag [#allocation3], %s220
        %s222 = sand.u32 %s71, 1
        %s223 = smul.addr %s222, 8
        %s224 = scalar_lea.vmem [#allocation2], %s223
        // Predicated region
        $region29: #{tpu_custom_call.1} parent=27 // pred_check
          %p225 = pneg %p81
        $region30: #{tpu_custom_call.1} parent=27 // pred_check_branch
          %227 = sbr.rel (%p225) target = $region32
        $region31: #{tpu_custom_call.1} parent=27 // pred_region
          %s229 = ssub.s32 128, 128
          %230 = vsyncadd %s221, %s229
          %s231 = smul.addr %s16, 128
          %s232 = scalar_lea.hbm %s2, %s231
          %s234 = sshll.u32 %s224, 4
          %s235 = int_to_ptr.vmem [resolvable:$true] %s234
          %237 = dma.vmem_to_hbm [thread:$0]  %s235, 128, %s232, %s221
        $region32: #{tpu_custom_call.1} parent=27 // pred_fallthru
          _
      $region28: #{tpu_custom_call.1} parent=5 // pred_fallthru
        _
      %p238 = scmp.le.s32.totalorder 2, %s11
      // Predicated region
      $region33: #{tpu_custom_call.1} parent=5 // pred_check
        %p239 = pneg %p238
      $region34: #{tpu_custom_call.1} parent=5 // pred_check_branch
        %241 = sbr.rel (%p239) target = $region36
      $region35: #{tpu_custom_call.1} parent=5 // pred_region
        %s242 = ssub.s32 %s11, 2
        // Predicated region
        $region37: #{tpu_custom_call.1} parent=35 // pred_check
          %p243 = pneg %p87
        $region38: #{tpu_custom_call.1} parent=35 // pred_check_branch
          %245 = sbr.rel (%p243) target = $region40
        $region39: #{tpu_custom_call.1} parent=35 // pred_region
          %s246 = sand.u32 %s72, 1
          %s247 = scalar_lea.sflag [#allocation3], %s246
          %s248 = sand.u32 %s72, 1
          %s249 = smul.addr %s248, 8
          %s250 = scalar_lea.vmem [#allocation2], %s249
          %251 = dma.done %s247, 128
        $region40: #{tpu_custom_call.1} parent=35 // pred_fallthru
          _
      $region36: #{tpu_custom_call.1} parent=5 // pred_fallthru
        _
    $region6: #{tpu_custom_call.1} parent=1 // loop_footer
      %s15 = sadd.s32 1, %s11
    $region7: #{tpu_custom_call.1} parent=1 // loop_footer_branch
      %10 = sbr.rel target = $region3
    $region8: #{tpu_custom_call.1} parent=1 // loop_exit
      _
    %252 = vsyncpa [#allocation3], 1
    %s253 = scalar_lea.sflag [#allocation3], 1
    %254 = vsyncpa %s253, 1

</llo_original>
